<compile_context>
chip_gen: v6e
topology: v6e:2x2x1
jax: 0.10.0
libtpu: 0.0.40
codegen_flags: <defaults>
</compile_context>

<pallas_src>
import functools

import jax
import jax.numpy as jnp
from jax.experimental import pallas as pl
from jax.experimental.pallas import tpu as pltpu


def _round_up(n, m):
    return ((n + m - 1) // m) * m


def _cdiv(a, b):
    return (a + b - 1) // b


# ---------------------------------------------------------------------------
# Kernel: decoded = relu(x @ We + be) @ Wd + bd   (We/Wd already in (K,N))
# ---------------------------------------------------------------------------
def _autoencoder_kernel(x_ref, we_ref, be_ref, wd_ref, bd_ref, *out_refs,
                        emit_encoded):
    x = x_ref[...]
    enc = jax.lax.dot_general(
        x, we_ref[...], (((1,), (0,)), ((), ())),
        preferred_element_type=jnp.float32)
    enc = jnp.maximum(enc + be_ref[...], 0.0)          # f32 epilogue (v5e-safe)
    dec = jax.lax.dot_general(
        enc.astype(wd_ref.dtype), wd_ref[...], (((1,), (0,)), ((), ())),
        preferred_element_type=jnp.float32)
    dec = dec + bd_ref[...]
    dec_ref = out_refs[0]
    dec_ref[...] = dec.astype(dec_ref.dtype)
    if emit_encoded:
        enc_ref = out_refs[1]
        enc_ref[...] = enc.astype(enc_ref.dtype)


# ---------------------------------------------------------------------------
# One-time (per model) parameter prep — outside the per-call hot path.
# ---------------------------------------------------------------------------
def prepare_params(w_enc, b_enc, w_dec, b_dec, *, compute_dtype=None):
    """Zero-pads feature dims to multiples of 128 (lane-dense MXU tiles, math
    stays exact) and pre-transposes weights into (K, N) layout. Optionally
    casts weights to a compute dtype (bf16 recommended on v6e/v7x)."""
    H, Din = w_enc.shape
    assert w_dec.shape == (Din, H)
    Dp, Hp = _round_up(Din, 128), _round_up(H, 128)
    wdt = compute_dtype if compute_dtype is not None else w_enc.dtype
    we = jnp.pad(w_enc.astype(wdt).T, ((0, Dp - Din), (0, Hp - H)))   # (Dp, Hp)
    wd = jnp.pad(w_dec.astype(wdt).T, ((0, Hp - H), (0, Dp - Din)))   # (Hp, Dp)
    be = jnp.pad(b_enc.astype(jnp.float32), (0, Hp - H)).reshape(1, Hp)
    bd = jnp.pad(b_dec.astype(jnp.float32), (0, Dp - Din)).reshape(1, Dp)
    return {"we": we, "be": be, "wd": wd, "bd": bd,
            "input_dim": Din, "hidden_dim": H, "Dp": Dp, "Hp": Hp,
            "compute_dtype": jnp.dtype(wdt)}


def _vmem_budget_bytes():
    # ~75% of the chip's physical VMEM (128 MiB v5e/v6e, 64 MiB v7x) so the
    # scoped-VMEM request never exceeds hardware; DMA/compiler headroom kept.
    try:
        cap = int(pltpu.get_tpu_info().vmem_capacity_bytes)
    except Exception:
        cap = 64 * 2 ** 20        # conservative (v7x-sized) fallback
    return (3 * cap) // 4


def _pick_tile_b(B, Dp, Hp, in_itemsize, out_itemsize, resident_bytes,
                 vmem_budget, emit_encoded):
    """Largest batch tile the VMEM budget allows (roofline fraction keeps
    rising up to ~512-1024-row tiles), shrunk only to keep >=2 grid steps for
    DMA/compute overlap and >=4 (even) steps for v7x megacore sharding."""
    sub = max(8, 32 // max(in_itemsize, 1))      # sublane multiple: 8 f32 / 16 bf16
    bp = _round_up(B, sub)
    out_cols = Dp + (Hp if emit_encoded else 0)
    per_row = 2 * (Dp * in_itemsize + out_cols * out_itemsize)   # double-buffered
    avail = max(vmem_budget - resident_bytes, sub * per_row)
    fit = max(sub, min(1024, (avail // per_row) // sub * sub))
    tile = min(fit, bp)
    if bp >= 4 * sub and _cdiv(bp, tile) < 4:
        tile = max(sub, (bp // 4) // sub * sub)
    elif bp >= 2 * sub and _cdiv(bp, tile) < 2:
        tile = max(sub, (bp // 2) // sub * sub)
    return tile


# ---------------------------------------------------------------------------
# Forward pass.
# ---------------------------------------------------------------------------
def autoencoder_forward(x, params, *, tile_b=None, return_encoded=True):
    """x: (B, input_dim). params: output of prepare_params().
    Returns (decoded, encoded) like the PyTorch module, or just decoded when
    return_encoded=False (skips the encoded HBM stores)."""
    B, Din = x.shape
    assert Din == params["input_dim"]
    H, Dp, Hp = params["hidden_dim"], params["Dp"], params["Hp"]
    we, be, wd, bd = params["we"], params["be"], params["wd"], params["bd"]
    cdt = params["compute_dtype"]
    out_dtype = x.dtype

    if x.dtype != cdt:
        x = x.astype(cdt)
    # Feature pad only when needed; the batch dim is never padded — the last
    # (possibly partial) grid block's out-of-range rows are not written back.
    if Dp != Din:
        x = jnp.pad(x, ((0, 0), (0, Dp - Din)))

    in_itemsize = jnp.dtype(cdt).itemsize
    out_itemsize = jnp.dtype(out_dtype).itemsize
    # Grid-invariant weights/biases are fetched once by the auto-pipeline but
    # occupy two VMEM buffers each — account for that in the budget.
    resident_bytes = 2 * (2 * Dp * Hp * in_itemsize + (Hp + Dp) * 4)
    vmem_budget = _vmem_budget_bytes()
    if tile_b is None:
        tile_b = _pick_tile_b(B, Dp, Hp, in_itemsize, out_itemsize,
                              resident_bytes, vmem_budget, return_encoded)

    grid = (_cdiv(B, tile_b),)

    out_cols = Dp + (Hp if return_encoded else 0)
    step_bytes = tile_b * (Dp * in_itemsize + out_cols * out_itemsize)
    vmem_limit = int(min(vmem_budget,
                         max(16 * 2 ** 20, 2 * (resident_bytes + 2 * step_bytes))))

    flops = 2 * 2 * B * Dp * Hp
    bytes_accessed = (B * Dp * in_itemsize                  # x
                      + 2 * Dp * Hp * in_itemsize           # both weights
                      + (Hp + Dp) * 4                       # biases (f32)
                      + B * out_cols * out_itemsize)        # outputs
    cost = pl.CostEstimate(flops=flops, transcendentals=0,
                           bytes_accessed=bytes_accessed)

    in_specs = [
        pl.BlockSpec((tile_b, Dp), lambda i: (i, 0)),   # x tile (streamed)
        pl.BlockSpec((Dp, Hp), lambda i: (0, 0)),       # We in (K,N) — resident
        pl.BlockSpec((1, Hp), lambda i: (0, 0)),        # be
        pl.BlockSpec((Hp, Dp), lambda i: (0, 0)),       # Wd in (K,N) — resident
        pl.BlockSpec((1, Dp), lambda i: (0, 0)),        # bd
    ]
    out_specs = [pl.BlockSpec((tile_b, Dp), lambda i: (i, 0))]   # decoded
    out_shapes = [jax.ShapeDtypeStruct((B, Dp), out_dtype)]
    if return_encoded:
        out_specs.append(pl.BlockSpec((tile_b, Hp), lambda i: (i, 0)))
        out_shapes.append(jax.ShapeDtypeStruct((B, Hp), out_dtype))

    outs = pl.pallas_call(
        functools.partial(_autoencoder_kernel, emit_encoded=return_encoded),
        out_shape=tuple(out_shapes),
        grid_spec=pltpu.PrefetchScalarGridSpec(
            num_scalar_prefetch=0,
            grid=grid,
            in_specs=in_specs,
            out_specs=tuple(out_specs),
        ),
        compiler_params=pltpu.CompilerParams(
            dimension_semantics=("parallel",),
            vmem_limit_bytes=vmem_limit),
        cost_estimate=cost,
    )(x, we, be, wd, bd)

    decoded = outs[0][:, :Din] if Dp != Din else outs[0]
    if not return_encoded:
        return decoded
    encoded = outs[1][:, :H] if Hp != H else outs[1]
    return decoded, encoded


def _reference(x, w_enc, b_enc, w_dec, b_dec):
    enc = jnp.maximum(x @ w_enc.T + b_enc, 0.0)
    dec = enc @ w_dec.T + b_dec
    return dec, enc


if __name__ == "__main__":
    # Small, deterministic shapes consistent with the module's forward.
    batch, input_dim, hidden_dim = 64, 32, 16

    key = jax.random.PRNGKey(0)
    kx, k1, k2, k3, k4 = jax.random.split(key, 5)
    x = jax.random.normal(kx, (batch, input_dim), dtype=jnp.float32)

    # Deterministic params mimicking nn.Linear's uniform(-1/sqrt(fan_in), +).
    bound_e = 1.0 / jnp.sqrt(jnp.float32(input_dim))
    bound_d = 1.0 / jnp.sqrt(jnp.float32(hidden_dim))
    w_enc = jax.random.uniform(k1, (hidden_dim, input_dim), jnp.float32,
                               -bound_e, bound_e)
    b_enc = jax.random.uniform(k2, (hidden_dim,), jnp.float32, -bound_e, bound_e)
    w_dec = jax.random.uniform(k3, (input_dim, hidden_dim), jnp.float32,
                               -bound_d, bound_d)
    b_dec = jax.random.uniform(k4, (input_dim,), jnp.float32, -bound_d, bound_d)

    # One-time parameter prep (pad + (K,N) transpose) outside the hot path.
    params = prepare_params(w_enc, b_enc, w_dec, b_dec)

    decoded, encoded = autoencoder_forward(x, params)
    decoded = jax.block_until_ready(decoded)
    encoded = jax.block_until_ready(encoded)

    dec_ref, enc_ref = _reference(x, w_enc, b_enc, w_dec, b_dec)
    assert decoded.shape == (batch, input_dim)
    assert encoded.shape == (batch, hidden_dim)
    assert jnp.allclose(decoded, dec_ref, atol=1e-5, rtol=1e-5)
    assert jnp.allclose(encoded, enc_ref, atol=1e-5, rtol=1e-5)

    # bf16 fast path (recommended default on v6e/v7x): f32 accumulation keeps
    # it close; decoded-only call also exercises the reduced-store variant.
    params_bf16 = prepare_params(w_enc, b_enc, w_dec, b_dec,
                                 compute_dtype=jnp.bfloat16)
    dec_bf16 = autoencoder_forward(x, params_bf16, return_encoded=False)
    dec_bf16 = jax.block_until_ready(dec_bf16)
    assert dec_bf16.shape == (batch, input_dim)
    assert bool(jnp.all(jnp.isfinite(dec_bf16)))
    assert jnp.allclose(dec_bf16, dec_ref, atol=0.15, rtol=0.1)

    print("KERNEL_OK")
</pallas_src>

<mosaic_0001>
module attributes {stable_mosaic.version = 11 : i64} {
  func.func @_autoencoder_kernel(%arg0: i32, %arg1: memref<16x128xf32, #tpu.memory_space<vmem>>, %arg2: memref<128x128xf32, #tpu.memory_space<vmem>>, %arg3: memref<1x128xf32, #tpu.memory_space<vmem>>, %arg4: memref<128x128xf32, #tpu.memory_space<vmem>>, %arg5: memref<1x128xf32, #tpu.memory_space<vmem>>, %arg6: memref<16x128xf32, #tpu.memory_space<vmem>>, %arg7: memref<16x128xf32, #tpu.memory_space<vmem>>) attributes {dimension_semantics = [#tpu.dimension_semantics<parallel>], iteration_bounds = array<i64: 4>, scalar_prefetch = 0 : i64, scratch_operands = 0 : i64, tpu.core_type = #tpu.core_type<tc>, window_params = [{transform_indices = @transform_0, window_bounds = array<i64: 16, 128>}, {pipeline_mode = #tpu.pipeline_mode<synchronous>, transform_indices = @transform_1, window_bounds = array<i64: 128, 128>}, {pipeline_mode = #tpu.pipeline_mode<synchronous>, transform_indices = @transform_2, window_bounds = array<i64: 1, 128>}, {pipeline_mode = #tpu.pipeline_mode<synchronous>, transform_indices = @transform_3, window_bounds = array<i64: 128, 128>}, {pipeline_mode = #tpu.pipeline_mode<synchronous>, transform_indices = @transform_4, window_bounds = array<i64: 1, 128>}, {transform_indices = @transform_5, window_bounds = array<i64: 16, 128>}, {transform_indices = @transform_6, window_bounds = array<i64: 16, 128>}]} {
    %c0 = arith.constant 0 : index
    %c0_0 = arith.constant 0 : index
    %0 = vector.load %arg1[%c0, %c0_0] : memref<16x128xf32, #tpu.memory_space<vmem>>, vector<16x128xf32>
    %c0_1 = arith.constant 0 : index
    %c0_2 = arith.constant 0 : index
    %1 = vector.load %arg2[%c0_1, %c0_2] : memref<128x128xf32, #tpu.memory_space<vmem>>, vector<128x128xf32>
    %cst = arith.constant dense<0.000000e+00> : vector<16x128xf32>
    %2 = tpu.matmul %0, %1, %cst {dimension_numbers = #tpu.dot_dimension_numbers<[1], [0], [0], [1], [0, 0, 1, 1], [], []>} : vector<16x128xf32>, vector<128x128xf32>, vector<16x128xf32> -> vector<16x128xf32>
    %c0_3 = arith.constant 0 : index
    %c0_4 = arith.constant 0 : index
    %3 = vector.load %arg3[%c0_3, %c0_4] : memref<1x128xf32, #tpu.memory_space<vmem>>, vector<1x128xf32>
    %4 = vector.broadcast %3 : vector<1x128xf32> to vector<16x128xf32>
    %5 = arith.addf %2, %4 : vector<16x128xf32>
    %cst_5 = arith.constant 0.000000e+00 : f32
    %6 = vector.broadcast %cst_5 : f32 to vector<16x128xf32>
    %7 = arith.maximumf %5, %6 : vector<16x128xf32>
    %c0_6 = arith.constant 0 : index
    %c0_7 = arith.constant 0 : index
    %8 = vector.load %arg4[%c0_6, %c0_7] : memref<128x128xf32, #tpu.memory_space<vmem>>, vector<128x128xf32>
    %cst_8 = arith.constant dense<0.000000e+00> : vector<16x128xf32>
    %9 = tpu.matmul %7, %8, %cst_8 {dimension_numbers = #tpu.dot_dimension_numbers<[1], [0], [0], [1], [0, 0, 1, 1], [], []>} : vector<16x128xf32>, vector<128x128xf32>, vector<16x128xf32> -> vector<16x128xf32>
    %c0_9 = arith.constant 0 : index
    %c0_10 = arith.constant 0 : index
    %10 = vector.load %arg5[%c0_9, %c0_10] : memref<1x128xf32, #tpu.memory_space<vmem>>, vector<1x128xf32>
    %11 = vector.broadcast %10 : vector<1x128xf32> to vector<16x128xf32>
    %12 = arith.addf %9, %11 : vector<16x128xf32>
    %c0_11 = arith.constant 0 : index
    %c0_12 = arith.constant 0 : index
    %13 = vector.load %arg6[%c0_11, %c0_12] : memref<16x128xf32, #tpu.memory_space<vmem>>, vector<16x128xf32>
    tpu.vector_store %arg6[%c0_11, %c0_12], %12 {strides = array<i32>} : memref<16x128xf32, #tpu.memory_space<vmem>>, vector<16x128xf32>,
    %c0_13 = arith.constant 0 : index
    %c0_14 = arith.constant 0 : index
    %14 = vector.load %arg7[%c0_13, %c0_14] : memref<16x128xf32, #tpu.memory_space<vmem>>, vector<16x128xf32>
    tpu.vector_store %arg7[%c0_13, %c0_14], %7 {strides = array<i32>} : memref<16x128xf32, #tpu.memory_space<vmem>>, vector<16x128xf32>,
    return
  }
  func.func @transform_0(%arg0: i32) -> (i32, i32) {
    %c0_i32 = arith.constant 0 : i32
    %c0_i32_0 = arith.constant 0 : i32
    return %arg0, %c0_i32 : i32, i32
  }
  func.func @transform_1(%arg0: i32) -> (i32, i32) {
    %c0_i32 = arith.constant 0 : i32
    %c0_i32_0 = arith.constant 0 : i32
    %c0_i32_1 = arith.constant 0 : i32
    return %c0_i32, %c0_i32_0 : i32, i32
  }
  func.func @transform_2(%arg0: i32) -> (i32, i32) {
    %c0_i32 = arith.constant 0 : i32
    %c0_i32_0 = arith.constant 0 : i32
    %c0_i32_1 = arith.constant 0 : i32
    return %c0_i32, %c0_i32_0 : i32, i32
  }
  func.func @transform_3(%arg0: i32) -> (i32, i32) {
    %c0_i32 = arith.constant 0 : i32
    %c0_i32_0 = arith.constant 0 : i32
    %c0_i32_1 = arith.constant 0 : i32
    return %c0_i32, %c0_i32_0 : i32, i32
  }
  func.func @transform_4(%arg0: i32) -> (i32, i32) {
    %c0_i32 = arith.constant 0 : i32
    %c0_i32_0 = arith.constant 0 : i32
    %c0_i32_1 = arith.constant 0 : i32
    return %c0_i32, %c0_i32_0 : i32, i32
  }
  func.func @transform_5(%arg0: i32) -> (i32, i32) {
    %c0_i32 = arith.constant 0 : i32
    %c0_i32_0 = arith.constant 0 : i32
    return %arg0, %c0_i32 : i32, i32
  }
  func.func @transform_6(%arg0: i32) -> (i32, i32) {
    %c0_i32 = arith.constant 0 : i32
    %c0_i32_0 = arith.constant 0 : i32
    return %arg0, %c0_i32 : i32, i32
  }
}

</mosaic_0001>

<llo_original>
// kernel: tpu_custom_call.1
$region0: #{tpu_custom_call.1}
  #allocation0 [shape = 'u32[]', space=smem, size = 0x4, offset = 0x4, fixed_abs, tag = 'smem constant byte address 0x4 - core index']
  #allocation1 [shape = 'u32[144,128]{1,0:T(1,128)}', space=vmem, size = 0x12000, scoped, tag = 'internal scratch']
  %s0 = inlined_call_operand.hbm [shape: f32[64,128], index: 0, kind: input, shape index: {}]
  %s1 = inlined_call_operand.hbm [shape: f32[128,128], index: 1, kind: input, shape index: {}]
  %s2 = inlined_call_operand.vmem [shape: f32[1,128], index: 2, kind: input, shape index: {}]
  %s3 = inlined_call_operand.hbm [shape: f32[128,128], index: 3, kind: input, shape index: {}]
  %s4 = inlined_call_operand.vmem [shape: f32[1,128], index: 4, kind: input, shape index: {}]
  %s5 = inlined_call_operand.hbm [shape: f32[64,128], index: 5, kind: output, shape index: {0}]
  %s6 = inlined_call_operand.hbm [shape: f32[64,128], index: 6, kind: output, shape index: {1}]
  %7 = xla_tuple %s5, %s6
  %s8 = sld [smem:[#allocation0]]
  $region73: #{tpu_custom_call.1} parent=0
    _
  %s10 = ssub.s32 1, %s8
  %s11 = scalar_select 0, %s10, %s8
  $region1: #{tpu_custom_call.1} parent=0
    #allocation2 [shape = 'u8[16384]{0}', space=vmem, size = 0x4000, scoped, tag = 'input window, operand 0']
    #allocation3 [shape = 's32[2]{0}', space=sflag, size = 0x8, scoped, tag = 'scoped memory for tpu_custom_call.1']
    #allocation4 [shape = 's32[2]{0}', space=sflag, size = 0x8, scoped, tag = 'scoped memory for tpu_custom_call.1']
    #allocation5 [shape = 'u8[65536]{0}', space=vmem, size = 0x10000, scoped, tag = 'input window, operand 1, single buffered']
    #allocation6 [shape = 's32[1]{0}', space=sflag, size = 0x4, scoped, tag = 'scoped memory for tpu_custom_call.1']
    #allocation7 [shape = 'u8[65536]{0}', space=vmem, size = 0x10000, scoped, tag = 'input window, operand 3, single buffered']
    #allocation8 [shape = 'u8[16384]{0}', space=vmem, size = 0x4000, scoped, tag = 'output window, operand 0']
    #allocation9 [shape = 'u8[16384]{0}', space=vmem, size = 0x4000, scoped, tag = 'output window, operand 1']
    #allocation10 [shape = 's32[2]{0}', space=sflag, size = 0x8, scoped, tag = 'scoped memory for tpu_custom_call.1']
    %12 = vsyncpa [#allocation3], 0
    %s13 = scalar_lea.sflag [#allocation3], 1
    %14 = vsyncpa %s13, 0
    %15 = vsyncpa [#allocation6], 0
    %16 = vsyncpa [#allocation4], 0
    %s17 = scalar_lea.sflag [#allocation4], 1
    %18 = vsyncpa %s17, 0
    %19 = vsyncpa [#allocation10], 0
    %s20 = scalar_lea.sflag [#allocation10], 1
    %21 = vsyncpa %s20, 0
    loop: start=0, step=1, limit=6
    $region2: #{tpu_custom_call.1} parent=1 // loop_pre_header
      _
    $region3: #{tpu_custom_call.1} parent=1 // loop_header
      %s23 = sphi 0, %s27
      %p24 = scmp.ge.s32.totalorder %s23, 6
      %s33 = sphi 0, %s35
      %s36 = sphi 0, %s33
      %s37 = sphi 0, %s36
      %s53 = sphi 0, %s37
      %s57 = sphi 0, %s57
      %s59 = sphi 0, %s57
      %s60 = sphi 0, %s59
      %s74 = sphi 0, %s60
      %s78 = sphi 0, %s78
      %s80 = sphi 0, %s78
      %s81 = sphi 0, %s80
      %s95 = sphi 0, %s81
      %s99 = sphi 0, %s99
      %s101 = sphi 0, %s99
      %s102 = sphi 0, %s101
      %s116 = sphi 0, %s102
      %s120 = sphi 0, %s120
      %s122 = sphi 0, %s120
      %s123 = sphi 0, %s122
      %s137 = sphi 0, %s123
      %s143 = sphi 0, %s145
      %s146 = sphi 0, %s143
      %s147 = sphi 0, %s146
      %s163 = sphi 0, %s147
      %s169 = sphi 0, %s171
      %s172 = sphi 0, %s169
      %s173 = sphi 0, %s172
      %s189 = sphi 0, %s173
    $region4: #{tpu_custom_call.1} parent=1 // loop_header_branch
      %26 = sbr.rel (%p24) target = $region8
    $region5: #{tpu_custom_call.1} parent=1 // loop_body
      %s28 = ssub.s32 %s23, 1
      %s29 = ssub.s32 %s23, 2
      %s30 = sadd.s32 %s23, 1
      %s31 = ssub.s32 %s23, %s30
      %p32 = scmp.eq.s32.totalorder %s31, 0
      %s34 = sadd.s32 %s33, 1
      %s35 = scalar_select %p32, %s33, %s34
      %p38 = pneg %p32
      %p39 = scmp.eq.s32.totalorder %s23, 3
      %p40 = por %p38, %p39
      %p41 = scmp.ne.s32.totalorder %s33, %s36
      %p42 = scmp.eq.s32.totalorder %s23, 0
      %p43 = por %p41, %p42
      %p44 = scmp.ne.s32.totalorder %s33, %s36
      %p45 = scmp.eq.s32.totalorder %s28, 3
      %p46 = por %p44, %p45
      %p47 = scmp.ne.s32.totalorder %s36, %s37
      %p48 = scmp.eq.s32.totalorder %s28, 0
      %p49 = por %p47, %p48
      %p50 = scmp.ne.s32.totalorder %s36, %s37
      %p51 = scmp.eq.s32.totalorder %s29, 3
      %p52 = por %p50, %p51
      %p54 = scmp.ne.s32.totalorder %s37, %s53
      %p55 = scmp.eq.s32.totalorder %s29, 0
      %p56 = por %p54, %p55
      %s58 = sadd.s32 %s57, 1
      %p61 = scmp.eq.s32.totalorder %s23, 3
      %p62 = scmp.ne.s32.totalorder %s57, %s59
      %p63 = scmp.eq.s32.totalorder %s23, 0
      %p64 = por %p62, %p63
      %p65 = scmp.ne.s32.totalorder %s57, %s59
      %p66 = scmp.eq.s32.totalorder %s28, 3
      %p67 = por %p65, %p66
      %p68 = scmp.ne.s32.totalorder %s59, %s60
      %p69 = scmp.eq.s32.totalorder %s28, 0
      %p70 = por %p68, %p69
      %p71 = scmp.ne.s32.totalorder %s59, %s60
      %p72 = scmp.eq.s32.totalorder %s29, 3
      %p73 = por %p71, %p72
      %p75 = scmp.ne.s32.totalorder %s60, %s74
      %p76 = scmp.eq.s32.totalorder %s29, 0
      %p77 = por %p75, %p76
      %s79 = sadd.s32 %s78, 1
      %p82 = scmp.eq.s32.totalorder %s23, 3
      %p83 = scmp.ne.s32.totalorder %s78, %s80
      %p84 = scmp.eq.s32.totalorder %s23, 0
      %p85 = por %p83, %p84
      %p86 = scmp.ne.s32.totalorder %s78, %s80
      %p87 = scmp.eq.s32.totalorder %s28, 3
      %p88 = por %p86, %p87
      %p89 = scmp.ne.s32.totalorder %s80, %s81
      %p90 = scmp.eq.s32.totalorder %s28, 0
      %p91 = por %p89, %p90
      %p92 = scmp.ne.s32.totalorder %s80, %s81
      %p93 = scmp.eq.s32.totalorder %s29, 3
      %p94 = por %p92, %p93
      %p96 = scmp.ne.s32.totalorder %s81, %s95
      %p97 = scmp.eq.s32.totalorder %s29, 0
      %p98 = por %p96, %p97
      %s100 = sadd.s32 %s99, 1
      %p103 = scmp.eq.s32.totalorder %s23, 3
      %p104 = scmp.ne.s32.totalorder %s99, %s101
      %p105 = scmp.eq.s32.totalorder %s23, 0
      %p106 = por %p104, %p105
      %p107 = scmp.ne.s32.totalorder %s99, %s101
      %p108 = scmp.eq.s32.totalorder %s28, 3
      %p109 = por %p107, %p108
      %p110 = scmp.ne.s32.totalorder %s101, %s102
      %p111 = scmp.eq.s32.totalorder %s28, 0
      %p112 = por %p110, %p111
      %p113 = scmp.ne.s32.totalorder %s101, %s102
      %p114 = scmp.eq.s32.totalorder %s29, 3
      %p115 = por %p113, %p114
      %p117 = scmp.ne.s32.totalorder %s102, %s116
      %p118 = scmp.eq.s32.totalorder %s29, 0
      %p119 = por %p117, %p118
      %s121 = sadd.s32 %s120, 1
      %p124 = scmp.eq.s32.totalorder %s23, 3
      %p125 = scmp.ne.s32.totalorder %s120, %s122
      %p126 = scmp.eq.s32.totalorder %s23, 0
      %p127 = por %p125, %p126
      %p128 = scmp.ne.s32.totalorder %s120, %s122
      %p129 = scmp.eq.s32.totalorder %s28, 3
      %p130 = por %p128, %p129
      %p131 = scmp.ne.s32.totalorder %s122, %s123
      %p132 = scmp.eq.s32.totalorder %s28, 0
      %p133 = por %p131, %p132
      %p134 = scmp.ne.s32.totalorder %s122, %s123
      %p135 = scmp.eq.s32.totalorder %s29, 3
      %p136 = por %p134, %p135
      %p138 = scmp.ne.s32.totalorder %s123, %s137
      %p139 = scmp.eq.s32.totalorder %s29, 0
      %p140 = por %p138, %p139
      %s141 = ssub.s32 %s23, %s30
      %p142 = scmp.eq.s32.totalorder %s141, 0
      %s144 = sadd.s32 %s143, 1
      %s145 = scalar_select %p142, %s143, %s144
      %p148 = pneg %p142
      %p149 = scmp.eq.s32.totalorder %s23, 3
      %p150 = por %p148, %p149
      %p151 = scmp.ne.s32.totalorder %s143, %s146
      %p152 = scmp.eq.s32.totalorder %s23, 0
      %p153 = por %p151, %p152
      %p154 = scmp.ne.s32.totalorder %s143, %s146
      %p155 = scmp.eq.s32.totalorder %s28, 3
      %p156 = por %p154, %p155
      %p157 = scmp.ne.s32.totalorder %s146, %s147
      %p158 = scmp.eq.s32.totalorder %s28, 0
      %p159 = por %p157, %p158
      %p160 = scmp.ne.s32.totalorder %s146, %s147
      %p161 = scmp.eq.s32.totalorder %s29, 3
      %p162 = por %p160, %p161
      %p164 = scmp.ne.s32.totalorder %s147, %s163
      %p165 = scmp.eq.s32.totalorder %s29, 0
      %p166 = por %p164, %p165
      %s167 = ssub.s32 %s23, %s30
      %p168 = scmp.eq.s32.totalorder %s167, 0
      %s170 = sadd.s32 %s169, 1
      %s171 = scalar_select %p168, %s169, %s170
      %p174 = pneg %p168
      %p175 = scmp.eq.s32.totalorder %s23, 3
      %p176 = por %p174, %p175
      %p177 = scmp.ne.s32.totalorder %s169, %s172
      %p178 = scmp.eq.s32.totalorder %s23, 0
      %p179 = por %p177, %p178
      %p180 = scmp.ne.s32.totalorder %s169, %s172
      %p181 = scmp.eq.s32.totalorder %s28, 3
      %p182 = por %p180, %p181
      %p183 = scmp.ne.s32.totalorder %s172, %s173
      %p184 = scmp.eq.s32.totalorder %s28, 0
      %p185 = por %p183, %p184
      %p186 = scmp.ne.s32.totalorder %s172, %s173
      %p187 = scmp.eq.s32.totalorder %s29, 3
      %p188 = por %p186, %p187
      %p190 = scmp.ne.s32.totalorder %s173, %s189
      %p191 = scmp.eq.s32.totalorder %s29, 0
      %p192 = por %p190, %p191
      %p193 = scmp.le.s32.totalorder 1, %s23
      %p194 = scmp.lt.s32.totalorder %s23, 5
      %p195 = pnand %p193, %p194
      %p196 = pneg %p195
      // Predicated region
      $region9: #{tpu_custom_call.1} parent=5 // pred_check
        _
      $region10: #{tpu_custom_call.1} parent=5 // pred_check_branch
        %198 = sbr.rel (%p195) target = $region12
      $region11: #{tpu_custom_call.1} parent=5 // pred_region
        %s199 = ssub.s32 %s23, 1
        // Predicated region
        $region13: #{tpu_custom_call.1} parent=11 // pred_check
          %p200 = pneg %p70
        $region14: #{tpu_custom_call.1} parent=11 // pred_check_branch
          %202 = sbr.rel (%p200) target = $region16
        $region15: #{tpu_custom_call.1} parent=11 // pred_region
          %s204 = ssub.s32 2048, 2048
          %205 = vsyncadd [#allocation6], %s204
          %s206 = sshll.u32 [#allocation5], 4
          %s207 = int_to_ptr.vmem [resolvable:$true] %s206
          %212 = dma.hbm_to_vmem [thread:$0]  %s1, 2048, %s207, [#allocation6], 128, 128, 8
        $region16: #{tpu_custom_call.1} parent=11 // pred_fallthru
          _
        // Predicated region
        $region17: #{tpu_custom_call.1} parent=11 // pred_check
          %p213 = pneg %p91
        $region18: #{tpu_custom_call.1} parent=11 // pred_check_branch
          %215 = sbr.rel (%p213) target = $region20
        $region19: #{tpu_custom_call.1} parent=11 // pred_region
          _
        $region20: #{tpu_custom_call.1} parent=11 // pred_fallthru
          _
        // Predicated region
        $region21: #{tpu_custom_call.1} parent=11 // pred_check
          %p216 = pneg %p112
        $region22: #{tpu_custom_call.1} parent=11 // pred_check_branch
          %218 = sbr.rel (%p216) target = $region24
        $region23: #{tpu_custom_call.1} parent=11 // pred_region
          %s220 = ssub.s32 2048, 2048
          %221 = vsyncadd [#allocation6], %s220
          %s222 = sshll.u32 [#allocation7], 4
          %s223 = int_to_ptr.vmem [resolvable:$true] %s222
          %228 = dma.hbm_to_vmem [thread:$0]  %s3, 2048, %s223, [#allocation6], 128, 128, 8
        $region24: #{tpu_custom_call.1} parent=11 // pred_fallthru
          _
        // Predicated region
        $region25: #{tpu_custom_call.1} parent=11 // pred_check
          %p229 = pneg %p133
        $region26: #{tpu_custom_call.1} parent=11 // pred_check_branch
          %231 = sbr.rel (%p229) target = $region28
        $region27: #{tpu_custom_call.1} parent=11 // pred_region
          _
        $region28: #{tpu_custom_call.1} parent=11 // pred_fallthru
          _
      $region12: #{tpu_custom_call.1} parent=5 // pred_fallthru
        _
      %p232 = scmp.lt.s32.totalorder %s23, 4
      // Predicated region
      $region29: #{tpu_custom_call.1} parent=5 // pred_check
        %p233 = pneg %p232
      $region30: #{tpu_custom_call.1} parent=5 // pred_check_branch
        %235 = sbr.rel (%p233) target = $region32
      $region31: #{tpu_custom_call.1} parent=5 // pred_region
        // Predicated region
        $region33: #{tpu_custom_call.1} parent=31 // pred_check
          %p236 = pneg %p43
        $region34: #{tpu_custom_call.1} parent=31 // pred_check_branch
          %238 = sbr.rel (%p236) target = $region36
        $region35: #{tpu_custom_call.1} parent=31 // pred_region
          %s239 = sand.u32 %s33, 1
          %s240 = scalar_lea.sflag [#allocation3], %s239
          %s241 = sand.u32 %s33, 1
          %s242 = smul.addr %s241, 16
          %s243 = scalar_lea.vmem [#allocation2], %s242
          %s244 = smul.u32 2, %s23
          %s246 = ssub.s32 256, 256
          %247 = vsyncadd %s240, %s246
          %s248 = smul.addr %s244, 128
          %s249 = scalar_lea.hbm %s0, %s248
          %s250 = sshll.u32 %s243, 4
          %s251 = int_to_ptr.vmem [resolvable:$true] %s250
          %256 = dma.hbm_to_vmem [thread:$0]  %s249, 256, %s251, %s240, 128, 128, 8
        $region36: #{tpu_custom_call.1} parent=31 // pred_fallthru
          _
      $region32: #{tpu_custom_call.1} parent=5 // pred_fallthru
        _
      %p257 = scmp.le.s32.totalorder 1, %s23
      %p258 = scmp.lt.s32.totalorder %s23, 5
      %p259 = pnand %p257, %p258
      %p260 = pneg %p259
      // Predicated region
      $region37: #{tpu_custom_call.1} parent=5 // pred_check
        _
      $region38: #{tpu_custom_call.1} parent=5 // pred_check_branch
        %262 = sbr.rel (%p259) target = $region40
      $region39: #{tpu_custom_call.1} parent=5 // pred_region
        %s263 = ssub.s32 %s23, 1
        %s264 = sand.u32 %s36, 1
        %s265 = scalar_lea.sflag [#allocation3], %s264
        %s266 = sand.u32 %s36, 1
        %s267 = smul.addr %s266, 16
        %s268 = scalar_lea.vmem [#allocation2], %s267
        // Predicated region
        $region41: #{tpu_custom_call.1} parent=39 // pred_check
          %p269 = pneg %p49
        $region42: #{tpu_custom_call.1} parent=39 // pred_check_branch
          %271 = sbr.rel (%p269) target = $region44
        $region43: #{tpu_custom_call.1} parent=39 // pred_region
          %272 = dma.done %s265, 256
        $region44: #{tpu_custom_call.1} parent=39 // pred_fallthru
          _
        // Predicated region
        $region45: #{tpu_custom_call.1} parent=39 // pred_check
          %p273 = pneg %p70
        $region46: #{tpu_custom_call.1} parent=39 // pred_check_branch
          %275 = sbr.rel (%p273) target = $region48
        $region47: #{tpu_custom_call.1} parent=39 // pred_region
          %276 = dma.done [#allocation6], 2048
        $region48: #{tpu_custom_call.1} parent=39 // pred_fallthru
          _
        // Predicated region
        $region49: #{tpu_custom_call.1} parent=39 // pred_check
          %p277 = pneg %p112
        $region50: #{tpu_custom_call.1} parent=39 // pred_check_branch
          %279 = sbr.rel (%p277) target = $region52
        $region51: #{tpu_custom_call.1} parent=39 // pred_region
          %280 = dma.done [#allocation6], 2048
        $region52: #{tpu_custom_call.1} parent=39 // pred_fallthru
          _
        %s281 = sand.u32 %s36, 1
        %s282 = scalar_lea.sflag [#allocation3], %s281
        %s283 = sand.u32 %s36, 1
        %s284 = smul.addr %s283, 16
        %s285 = scalar_lea.vmem [#allocation2], %s284
        %p286 = pneg %p49
        %p287 = pneg %p46
        %p288 = pneg %p70
        %p289 = pneg %p67
        %p290 = pneg %p91
        %p291 = pneg %p88
        %p292 = pneg %p112
        %p293 = pneg %p109
        %p294 = pneg %p133
        %p295 = pneg %p130
        %p296 = pneg %p159
        %p297 = pneg %p156
        %s298 = sand.u32 %s146, 1
        %s299 = scalar_lea.sflag [#allocation4], %s298
        %s300 = sand.u32 %s146, 1
        %s301 = smul.addr %s300, 16
        %s302 = scalar_lea.vmem [#allocation8], %s301
        %p303 = pneg %p185
        %p304 = pneg %p182
        %s305 = sand.u32 %s172, 1
        %s306 = scalar_lea.sflag [#allocation10], %s305
        %s307 = sand.u32 %s172, 1
        %s308 = smul.addr %s307, 16
        %s309 = scalar_lea.vmem [#allocation9], %s308
        %s310 = smul.u32 2, %s28
        %s311 = smul.u32 2, %s28
        %s312 = smul.u32 2, %s28
        %v313 = vld [vmem:[%s268] sm:$0xff]
        %v314 = vld [vmem:[%s268 + $0x8] sm:$0xff]
        %v315 = vld [vmem:[#allocation5] sm:$0xff]
        %v316 = vld [vmem:[#allocation5 + $0x8] sm:$0xff]
        %v317 = vld [vmem:[#allocation5 + $0x10] sm:$0xff]
        %v318 = vld [vmem:[#allocation5 + $0x18] sm:$0xff]
        %v319 = vld [vmem:[#allocation5 + $0x20] sm:$0xff]
        %v320 = vld [vmem:[#allocation5 + $0x28] sm:$0xff]
        %v321 = vld [vmem:[#allocation5 + $0x30] sm:$0xff]
        %v322 = vld [vmem:[#allocation5 + $0x38] sm:$0xff]
        %v323 = vld [vmem:[#allocation5 + $0x40] sm:$0xff]
        %v324 = vld [vmem:[#allocation5 + $0x48] sm:$0xff]
        %v325 = vld [vmem:[#allocation5 + $0x50] sm:$0xff]
        %v326 = vld [vmem:[#allocation5 + $0x58] sm:$0xff]
        %v327 = vld [vmem:[#allocation5 + $0x60] sm:$0xff]
        %v328 = vld [vmem:[#allocation5 + $0x68] sm:$0xff]
        %v329 = vld [vmem:[#allocation5 + $0x70] sm:$0xff]
        %v330 = vld [vmem:[#allocation5 + $0x78] sm:$0xff]
        %v331 = vld [vmem:[%s2] sm:$0x1]
        %v333 = vlaneseq
        %v334 = vshrl.u32 %v333, 7
        %v335 = vsub.s32 0, %v334
        %v336 = vrot.slane %v331, %v335
        %338 = vmatprep.subr.mxu0 0.0
        %339 = vmatpush1.msra.mxu0 %v330
        %340 = vmatprep.subr.mxu0 0.0
        %341 = vmatpush1.msra.mxu0 %v329
        %342 = vmatprep.subr.mxu0 0.0
        %343 = vmatpush1.msra.mxu0 %v328
        %344 = vmatprep.subr.mxu0 0.0
        %345 = vmatpush1.msra.mxu0 %v327
        %346 = vmatprep.subr.mxu0 0.0
        %347 = vmatpush1.msra.mxu0 %v326
        %348 = vmatprep.subr.mxu0 0.0
        %349 = vmatpush1.msra.mxu0 %v325
        %350 = vmatprep.subr.mxu0 0.0
        %351 = vmatpush1.msra.mxu0 %v324
        %352 = vmatprep.subr.mxu0 0.0
        %353 = vmatpush1.msra.mxu0 %v323
        %354 = vmatprep.subr.mxu0 0.0
        %355 = vmatpush1.msra.mxu0 %v322
        %356 = vmatprep.subr.mxu0 0.0
        %357 = vmatpush1.msra.mxu0 %v321
        %358 = vmatprep.subr.mxu0 0.0
        %359 = vmatpush1.msra.mxu0 %v320
        %360 = vmatprep.subr.mxu0 0.0
        %361 = vmatpush1.msra.mxu0 %v319
        %362 = vmatprep.subr.mxu0 0.0
        %363 = vmatpush1.msra.mxu0 %v318
        %364 = vmatprep.subr.mxu0 0.0
        %365 = vmatpush1.msra.mxu0 %v317
        %366 = vmatprep.subr.mxu0 0.0
        %367 = vmatpush1.msra.mxu0 %v316
        %368 = vmatprep.subr.mxu0 0.0
        %369 = vmatpush1.msra.mxu0 %v315
        %370 = vmatprep.subr.mxu0 0.0
        %371 = vmatpush2.msra.mxu0 0.0
        %372 = vmatprep.subr.mxu0 0.0
        %373 = vmatpush2.msra.mxu0 0.0
        %374 = vmatprep.subr.mxu0 0.0
        %375 = vmatpush2.msra.mxu0 0.0
        %376 = vmatprep.subr.mxu0 0.0
        %377 = vmatpush2.msra.mxu0 0.0
        %378 = vmatprep.subr.mxu0 0.0
        %379 = vmatpush2.msra.mxu0 0.0
        %380 = vmatprep.subr.mxu0 0.0
        %381 = vmatpush2.msra.mxu0 0.0
        %382 = vmatprep.subr.mxu0 0.0
        %383 = vmatpush2.msra.mxu0 0.0
        %384 = vmatprep.subr.mxu0 0.0
        %385 = vmatpush2.msra.mxu0 0.0
        %386 = vmatprep.subr.mxu0 0.0
        %387 = vmatpush2.msra.mxu0 0.0
        %388 = vmatprep.subr.mxu0 0.0
        %389 = vmatpush2.msra.mxu0 0.0
        %390 = vmatprep.subr.mxu0 0.0
        %391 = vmatpush2.msra.mxu0 0.0
        %392 = vmatprep.subr.mxu0 0.0
        %393 = vmatpush2.msra.mxu0 0.0
        %394 = vmatprep.subr.mxu0 0.0
        %395 = vmatpush2.msra.mxu0 0.0
        %396 = vmatprep.subr.mxu0 0.0
        %397 = vmatpush2.msra.mxu0 0.0
        %398 = vmatprep.subr.mxu0 0.0
        %399 = vmatpush2.msra.mxu0 0.0
        %400 = vmatprep.subr.mxu0 0.0
        %401 = vmatpush2.msra.mxu0 0.0
        %402 = vmatprep.mubr.f32.mxu0 0.0
        %403 = vmatmul.mubr.f32.gmra.mxu0 %v313
        %v404 = vpop.f32.mrf.mxu0
        %v405 = vadd.f32 %v336, %v404
        %v406 = vpop.f32.mrf.mxu0
        %407 = vmatprep.mubr.f32.mxu0 0.0
        %408 = vmatmul.mubr.f32.gmra.mxu0 %v314
        %v409 = vpop.f32.mrf.mxu0
        %v410 = vadd.f32 %v336, %v409
        %v411 = vpop.f32.mrf.mxu0
        %412 = vdwg.mxu0
        %v413 = vmax.f32 %v405, 0.0
        %v414 = vmax.f32 %v410, 0.0
        %v415 = vld [vmem:[#allocation7] sm:$0xff]
        %v416 = vld [vmem:[#allocation7 + $0x8] sm:$0xff]
        %v417 = vld [vmem:[#allocation7 + $0x10] sm:$0xff]
        %v418 = vld [vmem:[#allocation7 + $0x18] sm:$0xff]
        %v419 = vld [vmem:[#allocation7 + $0x20] sm:$0xff]
        %v420 = vld [vmem:[#allocation7 + $0x28] sm:$0xff]
        %v421 = vld [vmem:[#allocation7 + $0x30] sm:$0xff]
        %v422 = vld [vmem:[#allocation7 + $0x38] sm:$0xff]
        %v423 = vld [vmem:[#allocation7 + $0x40] sm:$0xff]
        %v424 = vld [vmem:[#allocation7 + $0x48] sm:$0xff]
        %v425 = vld [vmem:[#allocation7 + $0x50] sm:$0xff]
        %v426 = vld [vmem:[#allocation7 + $0x58] sm:$0xff]
        %v427 = vld [vmem:[#allocation7 + $0x60] sm:$0xff]
        %v428 = vld [vmem:[#allocation7 + $0x68] sm:$0xff]
        %v429 = vld [vmem:[#allocation7 + $0x70] sm:$0xff]
        %v430 = vld [vmem:[#allocation7 + $0x78] sm:$0xff]
        %v431 = vld [vmem:[%s4] sm:$0x1]
        %v433 = vlaneseq
        %v434 = vshrl.u32 %v433, 7
        %v435 = vsub.s32 0, %v434
        %v436 = vrot.slane %v431, %v435
        %438 = vmatprep.subr.mxu0 0.0
        %439 = vmatpush1.msra.mxu0 %v430
        %440 = vmatprep.subr.mxu0 0.0
        %441 = vmatpush1.msra.mxu0 %v429
        %442 = vmatprep.subr.mxu0 0.0
        %443 = vmatpush1.msra.mxu0 %v428
        %444 = vmatprep.subr.mxu0 0.0
        %445 = vmatpush1.msra.mxu0 %v427
        %446 = vmatprep.subr.mxu0 0.0
        %447 = vmatpush1.msra.mxu0 %v426
        %448 = vmatprep.subr.mxu0 0.0
        %449 = vmatpush1.msra.mxu0 %v425
        %450 = vmatprep.subr.mxu0 0.0
        %451 = vmatpush1.msra.mxu0 %v424
        %452 = vmatprep.subr.mxu0 0.0
        %453 = vmatpush1.msra.mxu0 %v423
        %454 = vmatprep.subr.mxu0 0.0
        %455 = vmatpush1.msra.mxu0 %v422
        %456 = vmatprep.subr.mxu0 0.0
        %457 = vmatpush1.msra.mxu0 %v421
        %458 = vmatprep.subr.mxu0 0.0
        %459 = vmatpush1.msra.mxu0 %v420
        %460 = vmatprep.subr.mxu0 0.0
        %461 = vmatpush1.msra.mxu0 %v419
        %462 = vmatprep.subr.mxu0 0.0
        %463 = vmatpush1.msra.mxu0 %v418
        %464 = vmatprep.subr.mxu0 0.0
        %465 = vmatpush1.msra.mxu0 %v417
        %466 = vmatprep.subr.mxu0 0.0
        %467 = vmatpush1.msra.mxu0 %v416
        %468 = vmatprep.subr.mxu0 0.0
        %469 = vmatpush1.msra.mxu0 %v415
        %470 = vmatprep.subr.mxu0 0.0
        %471 = vmatpush2.msra.mxu0 0.0
        %472 = vmatprep.subr.mxu0 0.0
        %473 = vmatpush2.msra.mxu0 0.0
        %474 = vmatprep.subr.mxu0 0.0
        %475 = vmatpush2.msra.mxu0 0.0
        %476 = vmatprep.subr.mxu0 0.0
        %477 = vmatpush2.msra.mxu0 0.0
        %478 = vmatprep.subr.mxu0 0.0
        %479 = vmatpush2.msra.mxu0 0.0
        %480 = vmatprep.subr.mxu0 0.0
        %481 = vmatpush2.msra.mxu0 0.0
        %482 = vmatprep.subr.mxu0 0.0
        %483 = vmatpush2.msra.mxu0 0.0
        %484 = vmatprep.subr.mxu0 0.0
        %485 = vmatpush2.msra.mxu0 0.0
        %486 = vmatprep.subr.mxu0 0.0
        %487 = vmatpush2.msra.mxu0 0.0
        %488 = vmatprep.subr.mxu0 0.0
        %489 = vmatpush2.msra.mxu0 0.0
        %490 = vmatprep.subr.mxu0 0.0
        %491 = vmatpush2.msra.mxu0 0.0
        %492 = vmatprep.subr.mxu0 0.0
        %493 = vmatpush2.msra.mxu0 0.0
        %494 = vmatprep.subr.mxu0 0.0
        %495 = vmatpush2.msra.mxu0 0.0
        %496 = vmatprep.subr.mxu0 0.0
        %497 = vmatpush2.msra.mxu0 0.0
        %498 = vmatprep.subr.mxu0 0.0
        %499 = vmatpush2.msra.mxu0 0.0
        %500 = vmatprep.subr.mxu0 0.0
        %501 = vmatpush2.msra.mxu0 0.0
        %502 = vmatprep.mubr.f32.mxu0 0.0
        %503 = vmatmul.mubr.f32.gmra.mxu0 %v413
        %v504 = vpop.f32.mrf.mxu0
        %v505 = vadd.f32 %v436, %v504
        %v506 = vpop.f32.mrf.mxu0
        %507 = vmatprep.mubr.f32.mxu0 0.0
        %508 = vmatmul.mubr.f32.gmra.mxu0 %v414
        %v509 = vpop.f32.mrf.mxu0
        %v510 = vadd.f32 %v436, %v509
        %v511 = vpop.f32.mrf.mxu0
        %512 = vdwg.mxu0
        %513 = vst [vmem:[%s302] sm:$0xff] %v505
        %514 = vst [vmem:[%s302 + $0x8] sm:$0xff] %v510
        %515 = vst [vmem:[%s309] sm:$0xff] %v413
        %516 = vst [vmem:[%s309 + $0x8] sm:$0xff] %v414
        %s517 = sand.u32 %s146, 1
        %s518 = scalar_lea.sflag [#allocation4], %s517
        %s519 = sand.u32 %s146, 1
        %s520 = smul.addr %s519, 16
        %s521 = scalar_lea.vmem [#allocation8], %s520
        %s522 = sand.u32 %s172, 1
        %s523 = scalar_lea.sflag [#allocation10], %s522
        %s524 = sand.u32 %s172, 1
        %s525 = smul.addr %s524, 16
        %s526 = scalar_lea.vmem [#allocation9], %s525
        // Predicated region
        $region53: #{tpu_custom_call.1} parent=39 // pred_check
          %p527 = pneg %p156
        $region54: #{tpu_custom_call.1} parent=39 // pred_check_branch
          %529 = sbr.rel (%p527) target = $region56
        $region55: #{tpu_custom_call.1} parent=39 // pred_region
          %s530 = smul.u32 2, %s28
          %s532 = ssub.s32 256, 256
          %533 = vsyncadd %s518, %s532
          %s534 = smul.addr %s530, 128
          %s535 = scalar_lea.hbm %s5, %s534
          %s536 = sshll.u32 %s521, 4
          %s537 = int_to_ptr.vmem [resolvable:$true] %s536
          %542 = dma.vmem_to_hbm [thread:$0]  %s537, 256, %s535, %s518, 128, 128, 8
        $region56: #{tpu_custom_call.1} parent=39 // pred_fallthru
          _
        // Predicated region
        $region57: #{tpu_custom_call.1} parent=39 // pred_check
          %p543 = pneg %p182
        $region58: #{tpu_custom_call.1} parent=39 // pred_check_branch
          %545 = sbr.rel (%p543) target = $region60
        $region59: #{tpu_custom_call.1} parent=39 // pred_region
          %s546 = smul.u32 2, %s28
          %s548 = ssub.s32 256, 256
          %549 = vsyncadd %s523, %s548
          %s550 = smul.addr %s546, 128
          %s551 = scalar_lea.hbm %s6, %s550
          %s552 = sshll.u32 %s526, 4
          %s553 = int_to_ptr.vmem [resolvable:$true] %s552
          %558 = dma.vmem_to_hbm [thread:$0]  %s553, 256, %s551, %s523, 128, 128, 8
        $region60: #{tpu_custom_call.1} parent=39 // pred_fallthru
          _
      $region40: #{tpu_custom_call.1} parent=5 // pred_fallthru
        _
      %p559 = scmp.le.s32.totalorder 2, %s23
      // Predicated region
      $region61: #{tpu_custom_call.1} parent=5 // pred_check
        %p560 = pneg %p559
      $region62: #{tpu_custom_call.1} parent=5 // pred_check_branch
        %562 = sbr.rel (%p560) target = $region64
      $region63: #{tpu_custom_call.1} parent=5 // pred_region
        %s563 = ssub.s32 %s23, 2
        // Predicated region
        $region65: #{tpu_custom_call.1} parent=63 // pred_check
          %p564 = pneg %p162
        $region66: #{tpu_custom_call.1} parent=63 // pred_check_branch
          %566 = sbr.rel (%p564) target = $region68
        $region67: #{tpu_custom_call.1} parent=63 // pred_region
          %s567 = sand.u32 %s147, 1
          %s568 = scalar_lea.sflag [#allocation4], %s567
          %s569 = sand.u32 %s147, 1
          %s570 = smul.addr %s569, 16
          %s571 = scalar_lea.vmem [#allocation8], %s570
          %572 = dma.done %s568, 256
        $region68: #{tpu_custom_call.1} parent=63 // pred_fallthru
          _
        // Predicated region
        $region69: #{tpu_custom_call.1} parent=63 // pred_check
          %p573 = pneg %p188
        $region70: #{tpu_custom_call.1} parent=63 // pred_check_branch
          %575 = sbr.rel (%p573) target = $region72
        $region71: #{tpu_custom_call.1} parent=63 // pred_region
          %s576 = sand.u32 %s173, 1
          %s577 = scalar_lea.sflag [#allocation10], %s576
          %s578 = sand.u32 %s173, 1
          %s579 = smul.addr %s578, 16
          %s580 = scalar_lea.vmem [#allocation9], %s579
          %581 = dma.done %s577, 256
        $region72: #{tpu_custom_call.1} parent=63 // pred_fallthru
          _
      $region64: #{tpu_custom_call.1} parent=5 // pred_fallthru
        _
    $region6: #{tpu_custom_call.1} parent=1 // loop_footer
      %s27 = sadd.s32 1, %s23
    $region7: #{tpu_custom_call.1} parent=1 // loop_footer_branch
      %22 = sbr.rel target = $region3
    $region8: #{tpu_custom_call.1} parent=1 // loop_exit
      _
    %582 = vsyncpa [#allocation3], 1
    %s583 = scalar_lea.sflag [#allocation3], 1
    %584 = vsyncpa %s583, 1
    %585 = vsyncpa [#allocation6], 1
    %586 = vsyncpa [#allocation4], 1
    %s587 = scalar_lea.sflag [#allocation4], 1
    %588 = vsyncpa %s587, 1
    %589 = vsyncpa [#allocation10], 1
    %s590 = scalar_lea.sflag [#allocation10], 1
    %591 = vsyncpa %s590, 1

</llo_original>
